<compile_context>
chip_gen: v6e
topology: v6e:2x2x1
jax: 0.10.0
libtpu: 0.0.40
codegen_flags: <defaults>
</compile_context>

<pallas_src>
import math

import jax
import jax.numpy as jnp
import numpy as np
from jax.experimental import pallas as pl
from jax.experimental.pallas import tpu as pltpu

_LANES = 128
_SUBLANES = 8


def _cdiv(a, b):
    return -(-a // b)


def _round_up(a, m):
    return _cdiv(a, m) * m


def _to_lane_dense(x, rows):
    """Flatten, zero-pad and reshape to a lane-dense (rows, 128) slab."""
    flat = x.reshape(-1)
    pad = rows * _LANES - flat.shape[0]
    flat = jnp.pad(flat, (0, pad))
    return flat.reshape(rows, _LANES)


def _tts_loss_kernel(
    dec_ling_ref, ref_ling_ref,
    pred_dur_ref, ref_dur_ref,
    dec_pamp_ref, ref_pamp_ref,
    dec_apamp_ref, ref_apamp_ref,
    dec_pitch_ref, ref_pitch_ref,
    out_ref, acc_ref,
):
    f32 = jnp.float32
    s = pl.program_id(0)          # parallel shard (maps across TCs on v7x)
    k = pl.program_id(1)          # sequential reduction step over linguistic rows
    nk = pl.num_programs(1)

    @pl.when(k == 0)
    def _():
        acc_ref[...] = jnp.zeros_like(acc_ref)

    # ---- linguistic masked squared diff, elementwise-accumulated (VPU) ----
    # (linguistic_multiplicator**2 is applied to the reduced sum in the wrapper)
    ref_l = ref_ling_ref[...].astype(f32)
    dec_l = dec_ling_ref[...].astype(f32)
    d = jnp.where(ref_l != 0, dec_l - ref_l, 0.0)
    acc_ref[...] += d * d

    @pl.when(k == nk - 1)
    def _():
        # Single cross-lane (XLU) reduce per shard in the epilogue.
        ling_sum = jnp.sum(acc_ref[...])

        row = jax.lax.broadcasted_iota(jnp.int32, (_SUBLANES, _LANES), 0)
        lane = jax.lax.broadcasted_iota(jnp.int32, (_SUBLANES, _LANES), 1)
        first = row == 0
        base = jnp.where(first & (lane == 0), ling_sum, 0.0).astype(f32)

        # Non-zero shards only carry their linguistic partial sum.
        @pl.when(s != 0)
        def _():
            out_ref[...] = base

        # Shard 0 additionally computes the tiny (B*T)-sized frame terms once.
        @pl.when(s == 0)
        def _():
            ref_pitch = ref_pitch_ref[...].astype(f32)
            pitch_nz = ref_pitch != 0

            def masked_abs_sum(pred, tgt):
                return jnp.sum(jnp.abs(jnp.where(pitch_nz, pred - tgt, 0.0)))

            pamp_sum = masked_abs_sum(dec_pamp_ref[...].astype(f32),
                                      ref_pamp_ref[...].astype(f32))
            apamp_sum = masked_abs_sum(dec_apamp_ref[...].astype(f32),
                                       ref_apamp_ref[...].astype(f32))
            pitch_sum = masked_abs_sum(dec_pitch_ref[...].astype(f32), ref_pitch)

            ref_dur = ref_dur_ref[...]
            dd = jnp.where(ref_dur != 0,
                           pred_dur_ref[...].astype(f32) - ref_dur.astype(f32),
                           0.0)
            dur_sum = jnp.sum(dd * dd)

            tile = base
            tile = jnp.where(first & (lane == 1), pamp_sum, tile)
            tile = jnp.where(first & (lane == 2), apamp_sum, tile)
            tile = jnp.where(first & (lane == 3), pitch_sum, tile)
            tile = jnp.where(first & (lane == 4), dur_sum, tile)
            out_ref[...] = tile


class TextToSpeechLossPallas:
    """JAX/Pallas port of TextToSpeechLoss.forward (mean reductions)."""

    NUM_SHARDS = 2           # v7x has 2 TensorCores; harmless on v5e/v6e.
    MAX_BLOCK_ROWS = 1024    # 1024x128 f32 block = 512 KiB; 2 streams double-
                             # buffered + f32 accumulator ~= 2.5 MiB VMEM.

    def __init__(self, pitch_weight, linguistic_weight, duration_weight,
                 linguistic_multiplicator=100.0):
        self.pitch_weight = float(pitch_weight)
        self.linguistic_weight = float(linguistic_weight)
        self.duration_weight = float(duration_weight)
        self.linguistic_multiplicator = float(linguistic_multiplicator)

    def __call__(self, pred_duration, decoded_linguistic_features, decoded_p_amp,
                 decoded_ap_amp, decoded_pitch, ref_duration,
                 ref_linguistic_features, ref_p_amp, ref_ap_amp, ref_pitch,
                 pitch_stats, mode):
        n_ling = int(math.prod(ref_linguistic_features.shape))
        n_pitch = int(math.prod(ref_pitch.shape))
        n_dur = int(math.prod(ref_duration.shape))

        num_shards = self.NUM_SHARDS
        rows_needed = _cdiv(max(n_ling, 1), _LANES)
        rows_per_shard = _cdiv(rows_needed, num_shards)
        block_rows = max(_SUBLANES,
                         min(self.MAX_BLOCK_ROWS, _round_up(rows_per_shard, _SUBLANES)))
        steps = max(1, _cdiv(rows_per_shard, block_rows))
        total_rows = num_shards * steps * block_rows

        pitch_rows = max(_SUBLANES, _round_up(_cdiv(max(n_pitch, 1), _LANES), _SUBLANES))
        dur_rows = max(_SUBLANES, _round_up(_cdiv(max(n_dur, 1), _LANES), _SUBLANES))

        # Lane-dense, zero-padded 2D slabs (bf16 inputs pass through unchanged
        # and are upcast per block inside the kernel).
        dec_ling = _to_lane_dense(decoded_linguistic_features, total_rows)
        ref_ling = _to_lane_dense(ref_linguistic_features, total_rows)
        pred_dur = _to_lane_dense(pred_duration, dur_rows)
        ref_dur = _to_lane_dense(ref_duration, dur_rows)
        dec_pamp = _to_lane_dense(decoded_p_amp, pitch_rows)
        ref_pamp = _to_lane_dense(ref_p_amp, pitch_rows)
        dec_apamp = _to_lane_dense(decoded_ap_amp, pitch_rows)
        ref_apamp = _to_lane_dense(ref_ap_amp, pitch_rows)
        dec_pitch = _to_lane_dense(decoded_pitch, pitch_rows)
        ref_pitch_2d = _to_lane_dense(ref_pitch, pitch_rows)

        ling_spec = pl.BlockSpec((block_rows, _LANES), lambda s, k: (s * steps + k, 0))
        pitch_spec = pl.BlockSpec((pitch_rows, _LANES), lambda s, k: (0, 0))
        dur_spec = pl.BlockSpec((dur_rows, _LANES), lambda s, k: (0, 0))

        inputs = (dec_ling, ref_ling, pred_dur, ref_dur, dec_pamp, ref_pamp,
                  dec_apamp, ref_apamp, dec_pitch, ref_pitch_2d)
        in_specs = [ling_spec, ling_spec, dur_spec, dur_spec,
                    pitch_spec, pitch_spec, pitch_spec, pitch_spec,
                    pitch_spec, pitch_spec]

        out_shape = jax.ShapeDtypeStruct((num_shards * _SUBLANES, _LANES), jnp.float32)
        out_spec = pl.BlockSpec((_SUBLANES, _LANES), lambda s, k: (s, 0))

        bytes_accessed = int(
            sum(int(math.prod(t.shape)) * t.dtype.itemsize for t in inputs)
            + num_shards * _SUBLANES * _LANES * 4)
        flops = int(3 * total_rows * _LANES
                    + 3 * (6 * pitch_rows + 2 * dur_rows) * _LANES)

        out = pl.pallas_call(
            _tts_loss_kernel,
            out_shape=out_shape,
            grid_spec=pltpu.PrefetchScalarGridSpec(
                num_scalar_prefetch=0,
                grid=(num_shards, steps),
                in_specs=in_specs,
                out_specs=out_spec,
                scratch_shapes=[pltpu.VMEM((block_rows, _LANES), jnp.float32)],
            ),
            compiler_params=pltpu.CompilerParams(
                dimension_semantics=("parallel", "arbitrary")),
            cost_estimate=pl.CostEstimate(
                flops=flops, transcendentals=0, bytes_accessed=bytes_accessed),
        )(*inputs)

        # (num_shards, 5) partial sums; non-linguistic frame terms only on shard 0.
        sums = jnp.sum(out.reshape(num_shards, _SUBLANES, _LANES)[:, 0, :5], axis=0)

        mult = self.linguistic_multiplicator
        pamp_rng = float(pitch_stats["p_amp"]["max"]) - float(pitch_stats["p_amp"]["min"])
        apamp_rng = float(pitch_stats["ap_amp"]["max"]) - float(pitch_stats["ap_amp"]["min"])
        pitch_rng = float(pitch_stats["pitch"]["max"]) - float(pitch_stats["pitch"]["min"])

        linguistic_loss = (mult * mult) * sums[0] / n_ling
        p_amp_loss = sums[1] / (pamp_rng * n_pitch)
        ap_amp_loss = sums[2] / (apamp_rng * n_pitch)
        pitch_loss = sums[3] / (pitch_rng * n_pitch)
        duration_loss = sums[4] / n_dur

        loss = (self.linguistic_weight * linguistic_loss
                + self.pitch_weight * (p_amp_loss + ap_amp_loss + pitch_loss)
                + self.duration_weight * duration_loss)

        # TODO(synk): PyTorch returns .item() floats in metrics; we return jnp
        # scalars to stay traceable under jit.
        metrics = {
            f"tts/{mode}/loss": loss,
            f"tts/{mode}/linguistic": linguistic_loss,
            f"tts/{mode}/p_amp": p_amp_loss,
            f"tts/{mode}/ap_amp": ap_amp_loss,
            f"tts/{mode}/pitch": pitch_loss,
            f"tts/{mode}/duration": duration_loss,
        }
        return loss, metrics


def _reference_jax(pred_duration, dec_ling, dec_pamp, dec_apamp, dec_pitch,
                   ref_duration, ref_ling, ref_pamp, ref_apamp, ref_pitch,
                   pitch_stats, weights, mult):
    """Pure-JAX reference mirroring the PyTorch forward (mean reductions)."""
    pw, lw, dw = weights

    def norm(v, mm):
        return (v - mm["min"]) / (mm["max"] - mm["min"])

    ling_mask = (ref_ling != 0).astype(jnp.float32)
    ling_loss = jnp.mean((mult * dec_ling * ling_mask - mult * ref_ling * ling_mask) ** 2)

    pitch_mask = (ref_pitch != 0).astype(jnp.float32)

    def mae(pred, tgt, mm):
        return jnp.mean(jnp.abs(norm(pred, mm) * pitch_mask - norm(tgt, mm) * pitch_mask))

    p_amp_loss = mae(dec_pamp, ref_pamp, pitch_stats["p_amp"])
    ap_amp_loss = mae(dec_apamp, ref_apamp, pitch_stats["ap_amp"])
    pitch_loss = mae(dec_pitch, ref_pitch, pitch_stats["pitch"])

    dur_mask = (ref_duration != 0).astype(jnp.float32)
    dur_loss = jnp.mean((pred_duration * dur_mask
                         - ref_duration.astype(jnp.float32) * dur_mask) ** 2)

    return lw * ling_loss + pw * (p_amp_loss + ap_amp_loss + pitch_loss) + dw * dur_loss


if __name__ == "__main__":
    B, T, D = 2, 8, 32
    key = jax.random.PRNGKey(0)
    keys = jax.random.split(key, 12)

    # Predictions
    pred_duration = jax.random.uniform(keys[0], (B, T), jnp.float32, 0.0, 5.0)
    decoded_linguistic = jax.random.normal(keys[1], (B, T, D), jnp.float32)
    decoded_p_amp = jax.random.uniform(keys[2], (B, T), jnp.float32, 0.0, 1.0)
    decoded_ap_amp = jax.random.uniform(keys[3], (B, T), jnp.float32, 0.0, 1.0)
    decoded_pitch = jax.random.uniform(keys[4], (B, T), jnp.float32, 50.0, 500.0)

    # References (zeros act as padding -> masks)
    ref_duration = (jax.random.randint(keys[5], (B, T), 0, 6)).astype(jnp.int32)
    ref_linguistic = jax.random.normal(keys[6], (B, T, D), jnp.float32)
    ref_linguistic = ref_linguistic * (jax.random.uniform(keys[7], (B, T, D)) > 0.3)
    ref_p_amp = jax.random.uniform(keys[8], (B, T), jnp.float32, 0.0, 1.0)
    ref_ap_amp = jax.random.uniform(keys[9], (B, T), jnp.float32, 0.0, 1.0)
    ref_pitch = jax.random.uniform(keys[10], (B, T), jnp.float32, 50.0, 500.0)
    ref_pitch = ref_pitch * (jax.random.uniform(keys[11], (B, T)) > 0.25)

    pitch_stats = {
        "p_amp": {"min": 0.0, "max": 1.0},
        "ap_amp": {"min": 0.0, "max": 1.0},
        "pitch": {"min": 50.0, "max": 500.0},
    }

    loss_mod = TextToSpeechLossPallas(
        pitch_weight=0.5, linguistic_weight=1.0, duration_weight=0.25,
        linguistic_multiplicator=100.0,
    )

    loss, metrics = loss_mod(
        pred_duration, decoded_linguistic, decoded_p_amp, decoded_ap_amp,
        decoded_pitch, ref_duration, ref_linguistic, ref_p_amp, ref_ap_amp,
        ref_pitch, pitch_stats, mode="train",
    )
    loss = jax.block_until_ready(loss)

    ref_loss = _reference_jax(
        pred_duration, decoded_linguistic, decoded_p_amp, decoded_ap_amp,
        decoded_pitch, ref_duration, ref_linguistic, ref_p_amp, ref_ap_amp,
        ref_pitch, pitch_stats, weights=(0.5, 1.0, 0.25), mult=100.0,
    )
    ref_loss = jax.block_until_ready(ref_loss)

    np.testing.assert_allclose(np.asarray(loss), np.asarray(ref_loss),
                               rtol=1e-5, atol=1e-5)
    print("KERNEL_OK")
</pallas_src>

<mosaic_0001>
module attributes {stable_mosaic.version = 11 : i64} {
  func.func @_tts_loss_kernel(%arg0: i32, %arg1: i32, %arg2: memref<8x128xf32, #tpu.memory_space<vmem>>, %arg3: memref<8x128xf32, #tpu.memory_space<vmem>>, %arg4: memref<8x128xf32, #tpu.memory_space<vmem>>, %arg5: memref<8x128xi32, #tpu.memory_space<vmem>>, %arg6: memref<8x128xf32, #tpu.memory_space<vmem>>, %arg7: memref<8x128xf32, #tpu.memory_space<vmem>>, %arg8: memref<8x128xf32, #tpu.memory_space<vmem>>, %arg9: memref<8x128xf32, #tpu.memory_space<vmem>>, %arg10: memref<8x128xf32, #tpu.memory_space<vmem>>, %arg11: memref<8x128xf32, #tpu.memory_space<vmem>>, %arg12: memref<8x128xf32, #tpu.memory_space<vmem>>, %arg13: memref<8x128xf32, #tpu.memory_space<vmem>>) attributes {dimension_semantics = [#tpu.dimension_semantics<parallel>, #tpu.dimension_semantics<arbitrary>], iteration_bounds = array<i64: 2, 1>, scalar_prefetch = 0 : i64, scratch_operands = 1 : i64, tpu.core_type = #tpu.core_type<tc>, window_params = [{transform_indices = @transform_0, window_bounds = array<i64: 8, 128>}, {transform_indices = @transform_1, window_bounds = array<i64: 8, 128>}, {pipeline_mode = #tpu.pipeline_mode<synchronous>, transform_indices = @transform_2, window_bounds = array<i64: 8, 128>}, {pipeline_mode = #tpu.pipeline_mode<synchronous>, transform_indices = @transform_3, window_bounds = array<i64: 8, 128>}, {pipeline_mode = #tpu.pipeline_mode<synchronous>, transform_indices = @transform_4, window_bounds = array<i64: 8, 128>}, {pipeline_mode = #tpu.pipeline_mode<synchronous>, transform_indices = @transform_5, window_bounds = array<i64: 8, 128>}, {pipeline_mode = #tpu.pipeline_mode<synchronous>, transform_indices = @transform_6, window_bounds = array<i64: 8, 128>}, {pipeline_mode = #tpu.pipeline_mode<synchronous>, transform_indices = @transform_7, window_bounds = array<i64: 8, 128>}, {pipeline_mode = #tpu.pipeline_mode<synchronous>, transform_indices = @transform_8, window_bounds = array<i64: 8, 128>}, {pipeline_mode = #tpu.pipeline_mode<synchronous>, transform_indices = @transform_9, window_bounds = array<i64: 8, 128>}, {transform_indices = @transform_10, window_bounds = array<i64: 8, 128>}]} {
    %c0_i32 = arith.constant 0 : i32
    %0 = arith.cmpi eq, %arg1, %c0_i32 : i32
    %1 = arith.extui %0 : i1 to i32
    %c0_i32_0 = arith.constant 0 : i32
    %2 = arith.cmpi ne, %1, %c0_i32_0 : i32
    scf.if %2 {
      %cst_11 = arith.constant 0.000000e+00 : f32
      %17 = vector.broadcast %cst_11 : f32 to vector<8x128xf32>
      %c0_12 = arith.constant 0 : index
      %c0_13 = arith.constant 0 : index
      %18 = vector.load %arg13[%c0_12, %c0_13] : memref<8x128xf32, #tpu.memory_space<vmem>>, vector<8x128xf32>
      tpu.vector_store %arg13[%c0_12, %c0_13], %17 {strides = array<i32>} : memref<8x128xf32, #tpu.memory_space<vmem>>, vector<8x128xf32>,
    } else {
    }
    %c0 = arith.constant 0 : index
    %c0_1 = arith.constant 0 : index
    %3 = vector.load %arg3[%c0, %c0_1] : memref<8x128xf32, #tpu.memory_space<vmem>>, vector<8x128xf32>
    %c0_2 = arith.constant 0 : index
    %c0_3 = arith.constant 0 : index
    %4 = vector.load %arg2[%c0_2, %c0_3] : memref<8x128xf32, #tpu.memory_space<vmem>>, vector<8x128xf32>
    %cst = arith.constant 0.000000e+00 : f32
    %5 = vector.broadcast %cst : f32 to vector<8x128xf32>
    %6 = arith.cmpf one, %3, %5 : vector<8x128xf32>
    %7 = arith.subf %4, %3 : vector<8x128xf32>
    %cst_4 = arith.constant 0.000000e+00 : f32
    %8 = vector.broadcast %cst_4 : f32 to vector<8x128xf32>
    %9 = arith.select %6, %7, %8 : vector<8x128xi1>, vector<8x128xf32>
    %c0_5 = arith.constant 0 : index
    %c0_6 = arith.constant 0 : index
    %10 = vector.load %arg13[%c0_5, %c0_6] : memref<8x128xf32, #tpu.memory_space<vmem>>, vector<8x128xf32>
    %11 = arith.mulf %9, %9 : vector<8x128xf32>
    %12 = arith.addf %10, %11 : vector<8x128xf32>
    %c0_7 = arith.constant 0 : index
    %c0_8 = arith.constant 0 : index
    %13 = vector.load %arg13[%c0_7, %c0_8] : memref<8x128xf32, #tpu.memory_space<vmem>>, vector<8x128xf32>
    tpu.vector_store %arg13[%c0_7, %c0_8], %12 {strides = array<i32>} : memref<8x128xf32, #tpu.memory_space<vmem>>, vector<8x128xf32>,
    %c0_i32_9 = arith.constant 0 : i32
    %14 = arith.cmpi eq, %arg1, %c0_i32_9 : i32
    %15 = arith.extui %14 : i1 to i32
    %c0_i32_10 = arith.constant 0 : i32
    %16 = arith.cmpi ne, %15, %c0_i32_10 : i32
    scf.if %16 {
      %c0_11 = arith.constant 0 : index
      %c0_12 = arith.constant 0 : index
      %17 = vector.load %arg13[%c0_11, %c0_12] : memref<8x128xf32, #tpu.memory_space<vmem>>, vector<8x128xf32>
      %18 = vector.shape_cast %17 : vector<8x128xf32> to vector<1x8x128xf32>
      %cst_13 = arith.constant dense<0.000000e+00> : vector<1xf32>
      %19 = vector.multi_reduction <add>, %18, %cst_13 [1, 2] : vector<1x8x128xf32> to vector<1xf32>
      %20 = vector.shape_cast %19 : vector<1xf32> to vector<1x1x1xf32>
      %21 = vector.extract %20[0, 0, 0] : f32 from vector<1x1x1xf32>
      %22 = tpu.iota {dimensions = array<i32: 0>} : vector<8x128xi32>
      %23 = tpu.iota {dimensions = array<i32: 1>} : vector<8x128xi32>
      %c0_i32_14 = arith.constant 0 : i32
      %24 = vector.broadcast %c0_i32_14 : i32 to vector<8x128xi32>
      %25 = arith.cmpi eq, %22, %24 : vector<8x128xi32>
      %c0_i32_15 = arith.constant 0 : i32
      %26 = vector.broadcast %c0_i32_15 : i32 to vector<8x128xi32>
      %27 = arith.cmpi eq, %23, %26 : vector<8x128xi32>
      %28 = arith.andi %25, %27 : vector<8x128xi1>
      %cst_16 = arith.constant 0.000000e+00 : f32
      %29 = vector.broadcast %21 : f32 to vector<8x128xf32>
      %30 = vector.broadcast %cst_16 : f32 to vector<8x128xf32>
      %31 = arith.select %28, %29, %30 : vector<8x128xi1>, vector<8x128xf32>
      %c0_i32_17 = arith.constant 0 : i32
      %32 = arith.cmpi ne, %arg0, %c0_i32_17 : i32
      %33 = arith.extui %32 : i1 to i32
      %c0_i32_18 = arith.constant 0 : i32
      %34 = arith.cmpi ne, %33, %c0_i32_18 : i32
      scf.if %34 {
        %c0_21 = arith.constant 0 : index
        %c0_22 = arith.constant 0 : index
        %38 = vector.load %arg12[%c0_21, %c0_22] : memref<8x128xf32, #tpu.memory_space<vmem>>, vector<8x128xf32>
        tpu.vector_store %arg12[%c0_21, %c0_22], %31 {strides = array<i32>} : memref<8x128xf32, #tpu.memory_space<vmem>>, vector<8x128xf32>,
      } else {
      }
      %c0_i32_19 = arith.constant 0 : i32
      %35 = arith.cmpi eq, %arg0, %c0_i32_19 : i32
      %36 = arith.extui %35 : i1 to i32
      %c0_i32_20 = arith.constant 0 : i32
      %37 = arith.cmpi ne, %36, %c0_i32_20 : i32
      scf.if %37 {
        %c0_21 = arith.constant 0 : index
        %c0_22 = arith.constant 0 : index
        %38 = vector.load %arg11[%c0_21, %c0_22] : memref<8x128xf32, #tpu.memory_space<vmem>>, vector<8x128xf32>
        %cst_23 = arith.constant 0.000000e+00 : f32
        %39 = vector.broadcast %cst_23 : f32 to vector<8x128xf32>
        %40 = arith.cmpf one, %38, %39 : vector<8x128xf32>
        %c0_24 = arith.constant 0 : index
        %c0_25 = arith.constant 0 : index
        %41 = vector.load %arg6[%c0_24, %c0_25] : memref<8x128xf32, #tpu.memory_space<vmem>>, vector<8x128xf32>
        %c0_26 = arith.constant 0 : index
        %c0_27 = arith.constant 0 : index
        %42 = vector.load %arg7[%c0_26, %c0_27] : memref<8x128xf32, #tpu.memory_space<vmem>>, vector<8x128xf32>
        %43 = arith.subf %41, %42 : vector<8x128xf32>
        %cst_28 = arith.constant 0.000000e+00 : f32
        %44 = vector.broadcast %cst_28 : f32 to vector<8x128xf32>
        %45 = arith.select %40, %43, %44 : vector<8x128xi1>, vector<8x128xf32>
        %46 = math.absf %45 : vector<8x128xf32>
        %47 = vector.shape_cast %46 : vector<8x128xf32> to vector<1x8x128xf32>
        %cst_29 = arith.constant dense<0.000000e+00> : vector<1xf32>
        %48 = vector.multi_reduction <add>, %47, %cst_29 [1, 2] : vector<1x8x128xf32> to vector<1xf32>
        %49 = vector.shape_cast %48 : vector<1xf32> to vector<1x1x1xf32>
        %50 = vector.extract %49[0, 0, 0] : f32 from vector<1x1x1xf32>
        %c0_30 = arith.constant 0 : index
        %c0_31 = arith.constant 0 : index
        %51 = vector.load %arg8[%c0_30, %c0_31] : memref<8x128xf32, #tpu.memory_space<vmem>>, vector<8x128xf32>
        %c0_32 = arith.constant 0 : index
        %c0_33 = arith.constant 0 : index
        %52 = vector.load %arg9[%c0_32, %c0_33] : memref<8x128xf32, #tpu.memory_space<vmem>>, vector<8x128xf32>
        %53 = arith.subf %51, %52 : vector<8x128xf32>
        %cst_34 = arith.constant 0.000000e+00 : f32
        %54 = vector.broadcast %cst_34 : f32 to vector<8x128xf32>
        %55 = arith.select %40, %53, %54 : vector<8x128xi1>, vector<8x128xf32>
        %56 = math.absf %55 : vector<8x128xf32>
        %57 = vector.shape_cast %56 : vector<8x128xf32> to vector<1x8x128xf32>
        %cst_35 = arith.constant dense<0.000000e+00> : vector<1xf32>
        %58 = vector.multi_reduction <add>, %57, %cst_35 [1, 2] : vector<1x8x128xf32> to vector<1xf32>
        %59 = vector.shape_cast %58 : vector<1xf32> to vector<1x1x1xf32>
        %60 = vector.extract %59[0, 0, 0] : f32 from vector<1x1x1xf32>
        %c0_36 = arith.constant 0 : index
        %c0_37 = arith.constant 0 : index
        %61 = vector.load %arg10[%c0_36, %c0_37] : memref<8x128xf32, #tpu.memory_space<vmem>>, vector<8x128xf32>
        %62 = arith.subf %61, %38 : vector<8x128xf32>
        %cst_38 = arith.constant 0.000000e+00 : f32
        %63 = vector.broadcast %cst_38 : f32 to vector<8x128xf32>
        %64 = arith.select %40, %62, %63 : vector<8x128xi1>, vector<8x128xf32>
        %65 = math.absf %64 : vector<8x128xf32>
        %66 = vector.shape_cast %65 : vector<8x128xf32> to vector<1x8x128xf32>
        %cst_39 = arith.constant dense<0.000000e+00> : vector<1xf32>
        %67 = vector.multi_reduction <add>, %66, %cst_39 [1, 2] : vector<1x8x128xf32> to vector<1xf32>
        %68 = vector.shape_cast %67 : vector<1xf32> to vector<1x1x1xf32>
        %69 = vector.extract %68[0, 0, 0] : f32 from vector<1x1x1xf32>
        %c0_40 = arith.constant 0 : index
        %c0_41 = arith.constant 0 : index
        %70 = vector.load %arg5[%c0_40, %c0_41] : memref<8x128xi32, #tpu.memory_space<vmem>>, vector<8x128xi32>
        %c0_i32_42 = arith.constant 0 : i32
        %71 = vector.broadcast %c0_i32_42 : i32 to vector<8x128xi32>
        %72 = arith.cmpi ne, %70, %71 : vector<8x128xi32>
        %c0_43 = arith.constant 0 : index
        %c0_44 = arith.constant 0 : index
        %73 = vector.load %arg4[%c0_43, %c0_44] : memref<8x128xf32, #tpu.memory_space<vmem>>, vector<8x128xf32>
        %74 = arith.sitofp %70 : vector<8x128xi32> to vector<8x128xf32>
        %75 = arith.subf %73, %74 : vector<8x128xf32>
        %cst_45 = arith.constant 0.000000e+00 : f32
        %76 = vector.broadcast %cst_45 : f32 to vector<8x128xf32>
        %77 = arith.select %72, %75, %76 : vector<8x128xi1>, vector<8x128xf32>
        %78 = arith.mulf %77, %77 : vector<8x128xf32>
        %79 = vector.shape_cast %78 : vector<8x128xf32> to vector<1x8x128xf32>
        %cst_46 = arith.constant dense<0.000000e+00> : vector<1xf32>
        %80 = vector.multi_reduction <add>, %79, %cst_46 [1, 2] : vector<1x8x128xf32> to vector<1xf32>
        %81 = vector.shape_cast %80 : vector<1xf32> to vector<1x1x1xf32>
        %82 = vector.extract %81[0, 0, 0] : f32 from vector<1x1x1xf32>
        %c1_i32 = arith.constant 1 : i32
        %83 = vector.broadcast %c1_i32 : i32 to vector<8x128xi32>
        %84 = arith.cmpi eq, %23, %83 : vector<8x128xi32>
        %85 = arith.andi %25, %84 : vector<8x128xi1>
        %86 = vector.broadcast %50 : f32 to vector<8x128xf32>
        %87 = arith.select %85, %86, %31 : vector<8x128xi1>, vector<8x128xf32>
        %c2_i32 = arith.constant 2 : i32
        %88 = vector.broadcast %c2_i32 : i32 to vector<8x128xi32>
        %89 = arith.cmpi eq, %23, %88 : vector<8x128xi32>
        %90 = arith.andi %25, %89 : vector<8x128xi1>
        %91 = vector.broadcast %60 : f32 to vector<8x128xf32>
        %92 = arith.select %90, %91, %87 : vector<8x128xi1>, vector<8x128xf32>
        %c3_i32 = arith.constant 3 : i32
        %93 = vector.broadcast %c3_i32 : i32 to vector<8x128xi32>
        %94 = arith.cmpi eq, %23, %93 : vector<8x128xi32>
        %95 = arith.andi %25, %94 : vector<8x128xi1>
        %96 = vector.broadcast %69 : f32 to vector<8x128xf32>
        %97 = arith.select %95, %96, %92 : vector<8x128xi1>, vector<8x128xf32>
        %c4_i32 = arith.constant 4 : i32
        %98 = vector.broadcast %c4_i32 : i32 to vector<8x128xi32>
        %99 = arith.cmpi eq, %23, %98 : vector<8x128xi32>
        %100 = arith.andi %25, %99 : vector<8x128xi1>
        %101 = vector.broadcast %82 : f32 to vector<8x128xf32>
        %102 = arith.select %100, %101, %97 : vector<8x128xi1>, vector<8x128xf32>
        %c0_47 = arith.constant 0 : index
        %c0_48 = arith.constant 0 : index
        %103 = vector.load %arg12[%c0_47, %c0_48] : memref<8x128xf32, #tpu.memory_space<vmem>>, vector<8x128xf32>
        tpu.vector_store %arg12[%c0_47, %c0_48], %102 {strides = array<i32>} : memref<8x128xf32, #tpu.memory_space<vmem>>, vector<8x128xf32>,
      } else {
      }
    } else {
    }
    return
  }
  func.func @transform_0(%arg0: i32, %arg1: i32) -> (i32, i32) {
    %c1_i32 = arith.constant 1 : i32
    %0 = arith.muli %arg0, %c1_i32 : i32
    %1 = arith.addi %0, %arg1 : i32
    %c0_i32 = arith.constant 0 : i32
    %c0_i32_0 = arith.constant 0 : i32
    return %1, %c0_i32 : i32, i32
  }
  func.func @transform_1(%arg0: i32, %arg1: i32) -> (i32, i32) {
    %c1_i32 = arith.constant 1 : i32
    %0 = arith.muli %arg0, %c1_i32 : i32
    %1 = arith.addi %0, %arg1 : i32
    %c0_i32 = arith.constant 0 : i32
    %c0_i32_0 = arith.constant 0 : i32
    return %1, %c0_i32 : i32, i32
  }
  func.func @transform_2(%arg0: i32, %arg1: i32) -> (i32, i32) {
    %c0_i32 = arith.constant 0 : i32
    %c0_i32_0 = arith.constant 0 : i32
    %c0_i32_1 = arith.constant 0 : i32
    return %c0_i32, %c0_i32_0 : i32, i32
  }
  func.func @transform_3(%arg0: i32, %arg1: i32) -> (i32, i32) {
    %c0_i32 = arith.constant 0 : i32
    %c0_i32_0 = arith.constant 0 : i32
    %c0_i32_1 = arith.constant 0 : i32
    return %c0_i32, %c0_i32_0 : i32, i32
  }
  func.func @transform_4(%arg0: i32, %arg1: i32) -> (i32, i32) {
    %c0_i32 = arith.constant 0 : i32
    %c0_i32_0 = arith.constant 0 : i32
    %c0_i32_1 = arith.constant 0 : i32
    return %c0_i32, %c0_i32_0 : i32, i32
  }
  func.func @transform_5(%arg0: i32, %arg1: i32) -> (i32, i32) {
    %c0_i32 = arith.constant 0 : i32
    %c0_i32_0 = arith.constant 0 : i32
    %c0_i32_1 = arith.constant 0 : i32
    return %c0_i32, %c0_i32_0 : i32, i32
  }
  func.func @transform_6(%arg0: i32, %arg1: i32) -> (i32, i32) {
    %c0_i32 = arith.constant 0 : i32
    %c0_i32_0 = arith.constant 0 : i32
    %c0_i32_1 = arith.constant 0 : i32
    return %c0_i32, %c0_i32_0 : i32, i32
  }
  func.func @transform_7(%arg0: i32, %arg1: i32) -> (i32, i32) {
    %c0_i32 = arith.constant 0 : i32
    %c0_i32_0 = arith.constant 0 : i32
    %c0_i32_1 = arith.constant 0 : i32
    return %c0_i32, %c0_i32_0 : i32, i32
  }
  func.func @transform_8(%arg0: i32, %arg1: i32) -> (i32, i32) {
    %c0_i32 = arith.constant 0 : i32
    %c0_i32_0 = arith.constant 0 : i32
    %c0_i32_1 = arith.constant 0 : i32
    return %c0_i32, %c0_i32_0 : i32, i32
  }
  func.func @transform_9(%arg0: i32, %arg1: i32) -> (i32, i32) {
    %c0_i32 = arith.constant 0 : i32
    %c0_i32_0 = arith.constant 0 : i32
    %c0_i32_1 = arith.constant 0 : i32
    return %c0_i32, %c0_i32_0 : i32, i32
  }
  func.func @transform_10(%arg0: i32, %arg1: i32) -> (i32, i32) {
    %c0_i32 = arith.constant 0 : i32
    %c0_i32_0 = arith.constant 0 : i32
    return %arg0, %c0_i32 : i32, i32
  }
}

</mosaic_0001>

<llo_original>
// kernel: tpu_custom_call.1
$region0: #{tpu_custom_call.1}
  #allocation0 [shape = 'u32[]', space=smem, size = 0x4, offset = 0x4, fixed_abs, tag = 'smem constant byte address 0x4 - core index']
  #allocation1 [shape = 'u32[144,128]{1,0:T(1,128)}', space=vmem, size = 0x12000, scoped, tag = 'internal scratch']
  #allocation2 [shape = 'f32[8,128]{1,0:T(8,128)}', space=vmem, size = 0x1000, scoped, tag = 'scratch operand']
  %s0 = inlined_call_operand.hbm [shape: f32[16,128], index: 0, kind: input, shape index: {}]
  %s1 = inlined_call_operand.hbm [shape: f32[16,128], index: 1, kind: input, shape index: {}]
  %s2 = inlined_call_operand.hbm [shape: f32[8,128], index: 2, kind: input, shape index: {}]
  %s3 = inlined_call_operand.hbm [shape: s32[8,128], index: 3, kind: input, shape index: {}]
  %s4 = inlined_call_operand.hbm [shape: f32[8,128], index: 4, kind: input, shape index: {}]
  %s5 = inlined_call_operand.vmem [shape: f32[8,128], index: 5, kind: input, shape index: {}]
  %s6 = inlined_call_operand.hbm [shape: f32[8,128], index: 6, kind: input, shape index: {}]
  %s7 = inlined_call_operand.hbm [shape: f32[8,128], index: 7, kind: input, shape index: {}]
  %s8 = inlined_call_operand.hbm [shape: f32[8,128], index: 8, kind: input, shape index: {}]
  %s9 = inlined_call_operand.vmem [shape: f32[8,128], index: 9, kind: input, shape index: {}]
  %s10 = inlined_call_operand.hbm [shape: f32[16,128], index: 10, kind: output, shape index: {}]
  %s11 = sld [smem:[#allocation0]]
  $region121: #{tpu_custom_call.1} parent=0
    _
  %s13 = ssub.s32 1, %s11
  %s14 = scalar_select 0, %s13, %s11
  $region1: #{tpu_custom_call.1} parent=0
    #allocation3 [shape = 'u8[8192]{0}', space=vmem, size = 0x2000, scoped, tag = 'input window, operand 0']
    #allocation4 [shape = 's32[2]{0}', space=sflag, size = 0x8, scoped, tag = 'scoped memory for tpu_custom_call.1']
    #allocation5 [shape = 's32[2]{0}', space=sflag, size = 0x8, scoped, tag = 'scoped memory for tpu_custom_call.1']
    #allocation6 [shape = 'u8[8192]{0}', space=vmem, size = 0x2000, scoped, tag = 'input window, operand 1']
    #allocation7 [shape = 's32[2]{0}', space=sflag, size = 0x8, scoped, tag = 'scoped memory for tpu_custom_call.1']
    #allocation8 [shape = 'u8[4096]{0}', space=vmem, size = 0x1000, scoped, tag = 'input window, operand 2, single buffered']
    #allocation9 [shape = 'u8[4096]{0}', space=vmem, size = 0x1000, scoped, tag = 'input window, operand 3, single buffered']
    #allocation10 [shape = 's32[1]{0}', space=sflag, size = 0x4, scoped, tag = 'scoped memory for tpu_custom_call.1']
    #allocation11 [shape = 'u8[4096]{0}', space=vmem, size = 0x1000, scoped, tag = 'input window, operand 4, single buffered']
    #allocation12 [shape = 'u8[4096]{0}', space=vmem, size = 0x1000, scoped, tag = 'input window, operand 6, single buffered']
    #allocation13 [shape = 's32[1]{0}', space=sflag, size = 0x4, scoped, tag = 'scoped memory for tpu_custom_call.1']
    #allocation14 [shape = 'u8[4096]{0}', space=vmem, size = 0x1000, scoped, tag = 'input window, operand 7, single buffered']
    #allocation15 [shape = 'u8[4096]{0}', space=vmem, size = 0x1000, scoped, tag = 'input window, operand 8, single buffered']
    #allocation16 [shape = 's32[1]{0}', space=sflag, size = 0x4, scoped, tag = 'scoped memory for tpu_custom_call.1']
    #allocation17 [shape = 'u8[8192]{0}', space=vmem, size = 0x2000, scoped, tag = 'output window, operand 0']
    %15 = vsyncpa [#allocation4], 0
    %s16 = scalar_lea.sflag [#allocation4], 1
    %17 = vsyncpa %s16, 0
    %18 = vsyncpa [#allocation7], 0
    %s19 = scalar_lea.sflag [#allocation7], 1
    %20 = vsyncpa %s19, 0
    %21 = vsyncpa [#allocation10], 0
    %22 = vsyncpa [#allocation13], 0
    %23 = vsyncpa [#allocation16], 0
    %24 = vsyncpa [#allocation5], 0
    %s25 = scalar_lea.sflag [#allocation5], 1
    %26 = vsyncpa %s25, 0
    loop: start=0, step=1, limit=4
    $region2: #{tpu_custom_call.1} parent=1 // loop_pre_header
      _
    $region3: #{tpu_custom_call.1} parent=1 // loop_header
      %s28 = sphi 0, %s32
      %p29 = scmp.ge.s32.totalorder %s28, 4
      %s35 = sphi 0, %s47
      %s36 = sphi 0, %s43
      %s37 = sphi 0, %s35
      %s38 = sphi 0, %s36
      %s39 = sphi 0, %s37
      %s40 = sphi 0, %s38
      %s52 = sphi 0, %s54
      %s55 = sphi 0, %s52
      %s56 = sphi 0, %s55
      %s72 = sphi 0, %s56
      %s80 = sphi 0, %s82
      %s83 = sphi 0, %s80
      %s84 = sphi 0, %s83
      %s100 = sphi 0, %s84
      %s104 = sphi 0, %s104
      %s106 = sphi 0, %s104
      %s107 = sphi 0, %s106
      %s121 = sphi 0, %s107
      %s125 = sphi 0, %s125
      %s127 = sphi 0, %s125
      %s128 = sphi 0, %s127
      %s142 = sphi 0, %s128
      %s146 = sphi 0, %s146
      %s148 = sphi 0, %s146
      %s149 = sphi 0, %s148
      %s163 = sphi 0, %s149
      %s167 = sphi 0, %s167
      %s169 = sphi 0, %s167
      %s170 = sphi 0, %s169
      %s184 = sphi 0, %s170
      %s188 = sphi 0, %s188
      %s190 = sphi 0, %s188
      %s191 = sphi 0, %s190
      %s205 = sphi 0, %s191
      %s209 = sphi 0, %s209
      %s211 = sphi 0, %s209
      %s212 = sphi 0, %s211
      %s226 = sphi 0, %s212
      %s230 = sphi 0, %s230
      %s232 = sphi 0, %s230
      %s233 = sphi 0, %s232
      %s247 = sphi 0, %s233
      %s251 = sphi 0, %s251
      %s253 = sphi 0, %s251
      %s254 = sphi 0, %s253
      %s268 = sphi 0, %s254
      %s274 = sphi 0, %s276
      %s277 = sphi 0, %s274
      %s278 = sphi 0, %s277
      %s294 = sphi 0, %s278
    $region4: #{tpu_custom_call.1} parent=1 // loop_header_branch
      %31 = sbr.rel (%p29) target = $region8
    $region5: #{tpu_custom_call.1} parent=1 // loop_body
      %s33 = ssub.s32 %s28, 1
      %s34 = ssub.s32 %s28, 2
      %s41 = sadd.s32 1, %s36
      %p42 = scmp.ge.s32.totalorder %s41, 1
      %s43 = scalar_select %p42, 0, %s41
      %s44 = sadd.s32 1, %s35
      %s45 = scalar_select %p42, %s44, %s35
      %p46 = scmp.ge.s32.totalorder %s45, 2
      %s47 = scalar_select %p46, 0, %s45
      %s48 = sadd.s32 %s35, %s36
      %s49 = sadd.s32 %s47, %s43
      %s50 = ssub.s32 %s48, %s49
      %p51 = scmp.eq.s32.totalorder %s50, 0
      %s53 = sadd.s32 %s52, 1
      %s54 = scalar_select %p51, %s52, %s53
      %p57 = pneg %p51
      %p58 = scmp.eq.s32.totalorder %s28, 1
      %p59 = por %p57, %p58
      %p60 = scmp.ne.s32.totalorder %s52, %s55
      %p61 = scmp.eq.s32.totalorder %s28, 0
      %p62 = por %p60, %p61
      %p63 = scmp.ne.s32.totalorder %s52, %s55
      %p64 = scmp.eq.s32.totalorder %s33, 1
      %p65 = por %p63, %p64
      %p66 = scmp.ne.s32.totalorder %s55, %s56
      %p67 = scmp.eq.s32.totalorder %s33, 0
      %p68 = por %p66, %p67
      %p69 = scmp.ne.s32.totalorder %s55, %s56
      %p70 = scmp.eq.s32.totalorder %s34, 1
      %p71 = por %p69, %p70
      %p73 = scmp.ne.s32.totalorder %s56, %s72
      %p74 = scmp.eq.s32.totalorder %s34, 0
      %p75 = por %p73, %p74
      %s76 = sadd.s32 %s35, %s36
      %s77 = sadd.s32 %s47, %s43
      %s78 = ssub.s32 %s76, %s77
      %p79 = scmp.eq.s32.totalorder %s78, 0
      %s81 = sadd.s32 %s80, 1
      %s82 = scalar_select %p79, %s80, %s81
      %p85 = pneg %p79
      %p86 = scmp.eq.s32.totalorder %s28, 1
      %p87 = por %p85, %p86
      %p88 = scmp.ne.s32.totalorder %s80, %s83
      %p89 = scmp.eq.s32.totalorder %s28, 0
      %p90 = por %p88, %p89
      %p91 = scmp.ne.s32.totalorder %s80, %s83
      %p92 = scmp.eq.s32.totalorder %s33, 1
      %p93 = por %p91, %p92
      %p94 = scmp.ne.s32.totalorder %s83, %s84
      %p95 = scmp.eq.s32.totalorder %s33, 0
      %p96 = por %p94, %p95
      %p97 = scmp.ne.s32.totalorder %s83, %s84
      %p98 = scmp.eq.s32.totalorder %s34, 1
      %p99 = por %p97, %p98
      %p101 = scmp.ne.s32.totalorder %s84, %s100
      %p102 = scmp.eq.s32.totalorder %s34, 0
      %p103 = por %p101, %p102
      %s105 = sadd.s32 %s104, 1
      %p108 = scmp.eq.s32.totalorder %s28, 1
      %p109 = scmp.ne.s32.totalorder %s104, %s106
      %p110 = scmp.eq.s32.totalorder %s28, 0
      %p111 = por %p109, %p110
      %p112 = scmp.ne.s32.totalorder %s104, %s106
      %p113 = scmp.eq.s32.totalorder %s33, 1
      %p114 = por %p112, %p113
      %p115 = scmp.ne.s32.totalorder %s106, %s107
      %p116 = scmp.eq.s32.totalorder %s33, 0
      %p117 = por %p115, %p116
      %p118 = scmp.ne.s32.totalorder %s106, %s107
      %p119 = scmp.eq.s32.totalorder %s34, 1
      %p120 = por %p118, %p119
      %p122 = scmp.ne.s32.totalorder %s107, %s121
      %p123 = scmp.eq.s32.totalorder %s34, 0
      %p124 = por %p122, %p123
      %s126 = sadd.s32 %s125, 1
      %p129 = scmp.eq.s32.totalorder %s28, 1
      %p130 = scmp.ne.s32.totalorder %s125, %s127
      %p131 = scmp.eq.s32.totalorder %s28, 0
      %p132 = por %p130, %p131
      %p133 = scmp.ne.s32.totalorder %s125, %s127
      %p134 = scmp.eq.s32.totalorder %s33, 1
      %p135 = por %p133, %p134
      %p136 = scmp.ne.s32.totalorder %s127, %s128
      %p137 = scmp.eq.s32.totalorder %s33, 0
      %p138 = por %p136, %p137
      %p139 = scmp.ne.s32.totalorder %s127, %s128
      %p140 = scmp.eq.s32.totalorder %s34, 1
      %p141 = por %p139, %p140
      %p143 = scmp.ne.s32.totalorder %s128, %s142
      %p144 = scmp.eq.s32.totalorder %s34, 0
      %p145 = por %p143, %p144
      %s147 = sadd.s32 %s146, 1
      %p150 = scmp.eq.s32.totalorder %s28, 1
      %p151 = scmp.ne.s32.totalorder %s146, %s148
      %p152 = scmp.eq.s32.totalorder %s28, 0
      %p153 = por %p151, %p152
      %p154 = scmp.ne.s32.totalorder %s146, %s148
      %p155 = scmp.eq.s32.totalorder %s33, 1
      %p156 = por %p154, %p155
      %p157 = scmp.ne.s32.totalorder %s148, %s149
      %p158 = scmp.eq.s32.totalorder %s33, 0
      %p159 = por %p157, %p158
      %p160 = scmp.ne.s32.totalorder %s148, %s149
      %p161 = scmp.eq.s32.totalorder %s34, 1
      %p162 = por %p160, %p161
      %p164 = scmp.ne.s32.totalorder %s149, %s163
      %p165 = scmp.eq.s32.totalorder %s34, 0
      %p166 = por %p164, %p165
      %s168 = sadd.s32 %s167, 1
      %p171 = scmp.eq.s32.totalorder %s28, 1
      %p172 = scmp.ne.s32.totalorder %s167, %s169
      %p173 = scmp.eq.s32.totalorder %s28, 0
      %p174 = por %p172, %p173
      %p175 = scmp.ne.s32.totalorder %s167, %s169
      %p176 = scmp.eq.s32.totalorder %s33, 1
      %p177 = por %p175, %p176
      %p178 = scmp.ne.s32.totalorder %s169, %s170
      %p179 = scmp.eq.s32.totalorder %s33, 0
      %p180 = por %p178, %p179
      %p181 = scmp.ne.s32.totalorder %s169, %s170
      %p182 = scmp.eq.s32.totalorder %s34, 1
      %p183 = por %p181, %p182
      %p185 = scmp.ne.s32.totalorder %s170, %s184
      %p186 = scmp.eq.s32.totalorder %s34, 0
      %p187 = por %p185, %p186
      %s189 = sadd.s32 %s188, 1
      %p192 = scmp.eq.s32.totalorder %s28, 1
      %p193 = scmp.ne.s32.totalorder %s188, %s190
      %p194 = scmp.eq.s32.totalorder %s28, 0
      %p195 = por %p193, %p194
      %p196 = scmp.ne.s32.totalorder %s188, %s190
      %p197 = scmp.eq.s32.totalorder %s33, 1
      %p198 = por %p196, %p197
      %p199 = scmp.ne.s32.totalorder %s190, %s191
      %p200 = scmp.eq.s32.totalorder %s33, 0
      %p201 = por %p199, %p200
      %p202 = scmp.ne.s32.totalorder %s190, %s191
      %p203 = scmp.eq.s32.totalorder %s34, 1
      %p204 = por %p202, %p203
      %p206 = scmp.ne.s32.totalorder %s191, %s205
      %p207 = scmp.eq.s32.totalorder %s34, 0
      %p208 = por %p206, %p207
      %s210 = sadd.s32 %s209, 1
      %p213 = scmp.eq.s32.totalorder %s28, 1
      %p214 = scmp.ne.s32.totalorder %s209, %s211
      %p215 = scmp.eq.s32.totalorder %s28, 0
      %p216 = por %p214, %p215
      %p217 = scmp.ne.s32.totalorder %s209, %s211
      %p218 = scmp.eq.s32.totalorder %s33, 1
      %p219 = por %p217, %p218
      %p220 = scmp.ne.s32.totalorder %s211, %s212
      %p221 = scmp.eq.s32.totalorder %s33, 0
      %p222 = por %p220, %p221
      %p223 = scmp.ne.s32.totalorder %s211, %s212
      %p224 = scmp.eq.s32.totalorder %s34, 1
      %p225 = por %p223, %p224
      %p227 = scmp.ne.s32.totalorder %s212, %s226
      %p228 = scmp.eq.s32.totalorder %s34, 0
      %p229 = por %p227, %p228
      %s231 = sadd.s32 %s230, 1
      %p234 = scmp.eq.s32.totalorder %s28, 1
      %p235 = scmp.ne.s32.totalorder %s230, %s232
      %p236 = scmp.eq.s32.totalorder %s28, 0
      %p237 = por %p235, %p236
      %p238 = scmp.ne.s32.totalorder %s230, %s232
      %p239 = scmp.eq.s32.totalorder %s33, 1
      %p240 = por %p238, %p239
      %p241 = scmp.ne.s32.totalorder %s232, %s233
      %p242 = scmp.eq.s32.totalorder %s33, 0
      %p243 = por %p241, %p242
      %p244 = scmp.ne.s32.totalorder %s232, %s233
      %p245 = scmp.eq.s32.totalorder %s34, 1
      %p246 = por %p244, %p245
      %p248 = scmp.ne.s32.totalorder %s233, %s247
      %p249 = scmp.eq.s32.totalorder %s34, 0
      %p250 = por %p248, %p249
      %s252 = sadd.s32 %s251, 1
      %p255 = scmp.eq.s32.totalorder %s28, 1
      %p256 = scmp.ne.s32.totalorder %s251, %s253
      %p257 = scmp.eq.s32.totalorder %s28, 0
      %p258 = por %p256, %p257
      %p259 = scmp.ne.s32.totalorder %s251, %s253
      %p260 = scmp.eq.s32.totalorder %s33, 1
      %p261 = por %p259, %p260
      %p262 = scmp.ne.s32.totalorder %s253, %s254
      %p263 = scmp.eq.s32.totalorder %s33, 0
      %p264 = por %p262, %p263
      %p265 = scmp.ne.s32.totalorder %s253, %s254
      %p266 = scmp.eq.s32.totalorder %s34, 1
      %p267 = por %p265, %p266
      %p269 = scmp.ne.s32.totalorder %s254, %s268
      %p270 = scmp.eq.s32.totalorder %s34, 0
      %p271 = por %p269, %p270
      %s272 = ssub.s32 %s35, %s47
      %p273 = scmp.eq.s32.totalorder %s272, 0
      %s275 = sadd.s32 %s274, 1
      %s276 = scalar_select %p273, %s274, %s275
      %p279 = pneg %p273
      %p280 = scmp.eq.s32.totalorder %s28, 1
      %p281 = por %p279, %p280
      %p282 = scmp.ne.s32.totalorder %s274, %s277
      %p283 = scmp.eq.s32.totalorder %s28, 0
      %p284 = por %p282, %p283
      %p285 = scmp.ne.s32.totalorder %s274, %s277
      %p286 = scmp.eq.s32.totalorder %s33, 1
      %p287 = por %p285, %p286
      %p288 = scmp.ne.s32.totalorder %s277, %s278
      %p289 = scmp.eq.s32.totalorder %s33, 0
      %p290 = por %p288, %p289
      %p291 = scmp.ne.s32.totalorder %s277, %s278
      %p292 = scmp.eq.s32.totalorder %s34, 1
      %p293 = por %p291, %p292
      %p295 = scmp.ne.s32.totalorder %s278, %s294
      %p296 = scmp.eq.s32.totalorder %s34, 0
      %p297 = por %p295, %p296
      %p298 = scmp.le.s32.totalorder 1, %s28
      %p299 = scmp.lt.s32.totalorder %s28, 3
      %p300 = pnand %p298, %p299
      %p301 = pneg %p300
      // Predicated region
      $region9: #{tpu_custom_call.1} parent=5 // pred_check
        _
      $region10: #{tpu_custom_call.1} parent=5 // pred_check_branch
        %303 = sbr.rel (%p300) target = $region12
      $region11: #{tpu_custom_call.1} parent=5 // pred_region
        %s304 = ssub.s32 %s28, 1
        // Predicated region
        $region13: #{tpu_custom_call.1} parent=11 // pred_check
          %p305 = pneg %p117
        $region14: #{tpu_custom_call.1} parent=11 // pred_check_branch
          %307 = sbr.rel (%p305) target = $region16
        $region15: #{tpu_custom_call.1} parent=11 // pred_region
          %s309 = ssub.s32 128, 128
          %310 = vsyncadd [#allocation7], %s309
          %s312 = sshll.u32 [#allocation8], 4
          %s313 = int_to_ptr.vmem [resolvable:$true] %s312
          %315 = dma.hbm_to_vmem [thread:$0]  %s2, 128, %s313, [#allocation7]
        $region16: #{tpu_custom_call.1} parent=11 // pred_fallthru
          _
        // Predicated region
        $region17: #{tpu_custom_call.1} parent=11 // pred_check
          %p316 = pneg %p138
        $region18: #{tpu_custom_call.1} parent=11 // pred_check_branch
          %318 = sbr.rel (%p316) target = $region20
        $region19: #{tpu_custom_call.1} parent=11 // pred_region
          %s320 = ssub.s32 128, 128
          %321 = vsyncadd [#allocation10], %s320
          %s323 = sshll.u32 [#allocation9], 4
          %s324 = int_to_ptr.vmem [resolvable:$true] %s323
          %326 = dma.hbm_to_vmem [thread:$0]  %s3, 128, %s324, [#allocation10]
        $region20: #{tpu_custom_call.1} parent=11 // pred_fallthru
          _
        // Predicated region
        $region21: #{tpu_custom_call.1} parent=11 // pred_check
          %p327 = pneg %p159
        $region22: #{tpu_custom_call.1} parent=11 // pred_check_branch
          %329 = sbr.rel (%p327) target = $region24
        $region23: #{tpu_custom_call.1} parent=11 // pred_region
          %s331 = ssub.s32 128, 128
          %332 = vsyncadd [#allocation10], %s331
          %s334 = sshll.u32 [#allocation11], 4
          %s335 = int_to_ptr.vmem [resolvable:$true] %s334
          %337 = dma.hbm_to_vmem [thread:$0]  %s4, 128, %s335, [#allocation10]
        $region24: #{tpu_custom_call.1} parent=11 // pred_fallthru
          _
        // Predicated region
        $region25: #{tpu_custom_call.1} parent=11 // pred_check
          %p338 = pneg %p180
        $region26: #{tpu_custom_call.1} parent=11 // pred_check_branch
          %340 = sbr.rel (%p338) target = $region28
        $region27: #{tpu_custom_call.1} parent=11 // pred_region
          _
        $region28: #{tpu_custom_call.1} parent=11 // pred_fallthru
          _
        // Predicated region
        $region29: #{tpu_custom_call.1} parent=11 // pred_check
          %p341 = pneg %p201
        $region30: #{tpu_custom_call.1} parent=11 // pred_check_branch
          %343 = sbr.rel (%p341) target = $region32
        $region31: #{tpu_custom_call.1} parent=11 // pred_region
          %s345 = ssub.s32 128, 128
          %346 = vsyncadd [#allocation13], %s345
          %s348 = sshll.u32 [#allocation12], 4
          %s349 = int_to_ptr.vmem [resolvable:$true] %s348
          %351 = dma.hbm_to_vmem [thread:$0]  %s6, 128, %s349, [#allocation13]
        $region32: #{tpu_custom_call.1} parent=11 // pred_fallthru
          _
        // Predicated region
        $region33: #{tpu_custom_call.1} parent=11 // pred_check
          %p352 = pneg %p222
        $region34: #{tpu_custom_call.1} parent=11 // pred_check_branch
          %354 = sbr.rel (%p352) target = $region36
        $region35: #{tpu_custom_call.1} parent=11 // pred_region
          %s356 = ssub.s32 128, 128
          %357 = vsyncadd [#allocation13], %s356
          %s359 = sshll.u32 [#allocation14], 4
          %s360 = int_to_ptr.vmem [resolvable:$true] %s359
          %362 = dma.hbm_to_vmem [thread:$0]  %s7, 128, %s360, [#allocation13]
        $region36: #{tpu_custom_call.1} parent=11 // pred_fallthru
          _
        // Predicated region
        $region37: #{tpu_custom_call.1} parent=11 // pred_check
          %p363 = pneg %p243
        $region38: #{tpu_custom_call.1} parent=11 // pred_check_branch
          %365 = sbr.rel (%p363) target = $region40
        $region39: #{tpu_custom_call.1} parent=11 // pred_region
          %s367 = ssub.s32 128, 128
          %368 = vsyncadd [#allocation16], %s367
          %s370 = sshll.u32 [#allocation15], 4
          %s371 = int_to_ptr.vmem [resolvable:$true] %s370
          %373 = dma.hbm_to_vmem [thread:$0]  %s8, 128, %s371, [#allocation16]
        $region40: #{tpu_custom_call.1} parent=11 // pred_fallthru
          _
        // Predicated region
        $region41: #{tpu_custom_call.1} parent=11 // pred_check
          %p374 = pneg %p264
        $region42: #{tpu_custom_call.1} parent=11 // pred_check_branch
          %376 = sbr.rel (%p374) target = $region44
        $region43: #{tpu_custom_call.1} parent=11 // pred_region
          _
        $region44: #{tpu_custom_call.1} parent=11 // pred_fallthru
          _
      $region12: #{tpu_custom_call.1} parent=5 // pred_fallthru
        _
      %p377 = scmp.lt.s32.totalorder %s28, 2
      // Predicated region
      $region45: #{tpu_custom_call.1} parent=5 // pred_check
        %p378 = pneg %p377
      $region46: #{tpu_custom_call.1} parent=5 // pred_check_branch
        %380 = sbr.rel (%p378) target = $region48
      $region47: #{tpu_custom_call.1} parent=5 // pred_region
        // Predicated region
        $region49: #{tpu_custom_call.1} parent=47 // pred_check
          %p381 = pneg %p62
        $region50: #{tpu_custom_call.1} parent=47 // pred_check_branch
          %383 = sbr.rel (%p381) target = $region52
        $region51: #{tpu_custom_call.1} parent=47 // pred_region
          %s384 = sand.u32 %s52, 1
          %s385 = scalar_lea.sflag [#allocation4], %s384
          %s386 = sand.u32 %s52, 1
          %s387 = smul.addr %s386, 8
          %s388 = scalar_lea.vmem [#allocation3], %s387
          %s389 = sadd.s32 %s35, %s36
          %s391 = ssub.s32 128, 128
          %392 = vsyncadd %s385, %s391
          %s393 = smul.addr %s389, 128
          %s394 = scalar_lea.hbm %s0, %s393
          %s396 = sshll.u32 %s388, 4
          %s397 = int_to_ptr.vmem [resolvable:$true] %s396
          %399 = dma.hbm_to_vmem [thread:$0]  %s394, 128, %s397, %s385
        $region52: #{tpu_custom_call.1} parent=47 // pred_fallthru
          _
        // Predicated region
        $region53: #{tpu_custom_call.1} parent=47 // pred_check
          %p400 = pneg %p90
        $region54: #{tpu_custom_call.1} parent=47 // pred_check_branch
          %402 = sbr.rel (%p400) target = $region56
        $region55: #{tpu_custom_call.1} parent=47 // pred_region
          %s403 = sand.u32 %s28, 1
          %s404 = scalar_lea.sflag [#allocation7], %s403
          %s405 = sand.u32 %s80, 1
          %s406 = smul.addr %s405, 8
          %s407 = scalar_lea.vmem [#allocation6], %s406
          %s408 = sadd.s32 %s35, %s36
          %s410 = ssub.s32 128, 128
          %411 = vsyncadd %s404, %s410
          %s412 = smul.addr %s408, 128
          %s413 = scalar_lea.hbm %s1, %s412
          %s415 = sshll.u32 %s407, 4
          %s416 = int_to_ptr.vmem [resolvable:$true] %s415
          %418 = dma.hbm_to_vmem [thread:$0]  %s413, 128, %s416, %s404
        $region56: #{tpu_custom_call.1} parent=47 // pred_fallthru
          _
      $region48: #{tpu_custom_call.1} parent=5 // pred_fallthru
        _
      %p419 = scmp.le.s32.totalorder 1, %s28
      %p420 = scmp.lt.s32.totalorder %s28, 3
      %p421 = pnand %p419, %p420
      %p422 = pneg %p421
      // Predicated region
      $region57: #{tpu_custom_call.1} parent=5 // pred_check
        _
      $region58: #{tpu_custom_call.1} parent=5 // pred_check_branch
        %424 = sbr.rel (%p421) target = $region60
      $region59: #{tpu_custom_call.1} parent=5 // pred_region
        %s425 = ssub.s32 %s28, 1
        %s426 = sand.u32 %s55, 1
        %s427 = scalar_lea.sflag [#allocation4], %s426
        %s428 = sand.u32 %s55, 1
        %s429 = smul.addr %s428, 8
        %s430 = scalar_lea.vmem [#allocation3], %s429
        // Predicated region
        $region61: #{tpu_custom_call.1} parent=59 // pred_check
          %p431 = pneg %p68
        $region62: #{tpu_custom_call.1} parent=59 // pred_check_branch
          %433 = sbr.rel (%p431) target = $region64
        $region63: #{tpu_custom_call.1} parent=59 // pred_region
          %434 = dma.done %s427, 128
        $region64: #{tpu_custom_call.1} parent=59 // pred_fallthru
          _
        %s435 = sand.u32 %s33, 1
        %s436 = scalar_lea.sflag [#allocation7], %s435
        %s437 = sand.u32 %s83, 1
        %s438 = smul.addr %s437, 8
        %s439 = scalar_lea.vmem [#allocation6], %s438
        // Predicated region
        $region65: #{tpu_custom_call.1} parent=59 // pred_check
          %p440 = pneg %p96
        $region66: #{tpu_custom_call.1} parent=59 // pred_check_branch
          %442 = sbr.rel (%p440) target = $region68
        $region67: #{tpu_custom_call.1} parent=59 // pred_region
          %443 = dma.done %s436, 128
        $region68: #{tpu_custom_call.1} parent=59 // pred_fallthru
          _
        // Predicated region
        $region69: #{tpu_custom_call.1} parent=59 // pred_check
          %p444 = pneg %p117
        $region70: #{tpu_custom_call.1} parent=59 // pred_check_branch
          %446 = sbr.rel (%p444) target = $region72
        $region71: #{tpu_custom_call.1} parent=59 // pred_region
          %447 = dma.done [#allocation7], 128
        $region72: #{tpu_custom_call.1} parent=59 // pred_fallthru
          _
        // Predicated region
        $region73: #{tpu_custom_call.1} parent=59 // pred_check
          %p448 = pneg %p138
        $region74: #{tpu_custom_call.1} parent=59 // pred_check_branch
          %450 = sbr.rel (%p448) target = $region76
        $region75: #{tpu_custom_call.1} parent=59 // pred_region
          %451 = dma.done [#allocation10], 128
        $region76: #{tpu_custom_call.1} parent=59 // pred_fallthru
          _
        // Predicated region
        $region77: #{tpu_custom_call.1} parent=59 // pred_check
          %p452 = pneg %p159
        $region78: #{tpu_custom_call.1} parent=59 // pred_check_branch
          %454 = sbr.rel (%p452) target = $region80
        $region79: #{tpu_custom_call.1} parent=59 // pred_region
          %455 = dma.done [#allocation10], 128
        $region80: #{tpu_custom_call.1} parent=59 // pred_fallthru
          _
        // Predicated region
        $region81: #{tpu_custom_call.1} parent=59 // pred_check
          %p456 = pneg %p201
        $region82: #{tpu_custom_call.1} parent=59 // pred_check_branch
          %458 = sbr.rel (%p456) target = $region84
        $region83: #{tpu_custom_call.1} parent=59 // pred_region
          %459 = dma.done [#allocation13], 128
        $region84: #{tpu_custom_call.1} parent=59 // pred_fallthru
          _
        // Predicated region
        $region85: #{tpu_custom_call.1} parent=59 // pred_check
          %p460 = pneg %p222
        $region86: #{tpu_custom_call.1} parent=59 // pred_check_branch
          %462 = sbr.rel (%p460) target = $region88
        $region87: #{tpu_custom_call.1} parent=59 // pred_region
          %463 = dma.done [#allocation13], 128
        $region88: #{tpu_custom_call.1} parent=59 // pred_fallthru
          _
        // Predicated region
        $region89: #{tpu_custom_call.1} parent=59 // pred_check
          %p464 = pneg %p243
        $region90: #{tpu_custom_call.1} parent=59 // pred_check_branch
          %466 = sbr.rel (%p464) target = $region92
        $region91: #{tpu_custom_call.1} parent=59 // pred_region
          %467 = dma.done [#allocation16], 128
        $region92: #{tpu_custom_call.1} parent=59 // pred_fallthru
          _
        %s468 = sand.u32 %s55, 1
        %s469 = scalar_lea.sflag [#allocation4], %s468
        %s470 = sand.u32 %s55, 1
        %s471 = smul.addr %s470, 8
        %s472 = scalar_lea.vmem [#allocation3], %s471
        %p473 = pneg %p68
        %p474 = pneg %p65
        %s475 = sand.u32 %s33, 1
        %s476 = scalar_lea.sflag [#allocation7], %s475
        %s477 = sand.u32 %s83, 1
        %s478 = smul.addr %s477, 8
        %s479 = scalar_lea.vmem [#allocation6], %s478
        %p480 = pneg %p96
        %p481 = pneg %p93
        %p482 = pneg %p117
        %p483 = pneg %p114
        %p484 = pneg %p138
        %p485 = pneg %p135
        %p486 = pneg %p159
        %p487 = pneg %p156
        %p488 = pneg %p180
        %p489 = pneg %p177
        %p490 = pneg %p201
        %p491 = pneg %p198
        %p492 = pneg %p222
        %p493 = pneg %p219
        %p494 = pneg %p243
        %p495 = pneg %p240
        %p496 = pneg %p264
        %p497 = pneg %p261
        %p498 = pneg %p290
        %p499 = pneg %p287
        %s500 = sand.u32 %s277, 1
        %s501 = scalar_lea.sflag [#allocation5], %s500
        %s502 = sand.u32 %s277, 1
        %s503 = smul.addr %s502, 8
        %s504 = scalar_lea.vmem [#allocation17], %s503
        %s505 = sadd.s32 %s37, %s38
        %s506 = sadd.s32 %s37, %s38
        %p507 = scmp.eq.s32.totalorder %s38, 0
        // Predicated region
        $region93: #{tpu_custom_call.1} parent=59 // pred_check
          %p508 = pneg %p507
        $region94: #{tpu_custom_call.1} parent=59 // pred_check_branch
          %510 = sbr.rel (%p508) target = $region96
        $region95: #{tpu_custom_call.1} parent=59 // pred_region
          %511 = vst [vmem:[#allocation2] sm:$0xff] 0.0
        $region96: #{tpu_custom_call.1} parent=59 // pred_fallthru
          _
        %v512 = vld [vmem:[%s439] sm:$0xff]
        %v513 = vld [vmem:[%s430] sm:$0xff]
        %vm514 = vcmp.ne.f32.partialorder %v512, 0.0
        %v515 = vsub.f32 %v513, %v512
        %v516 = vsel %vm514, %v515, 0.0
        %v517 = vld [vmem:[#allocation2] sm:$0xff]
        %v518 = vmul.f32 %v516, %v516
        %v519 = vadd.f32 %v517, %v518
        %520 = vst [vmem:[#allocation2] sm:$0xff] %v519
        // Predicated region
        $region97: #{tpu_custom_call.1} parent=59 // pred_check
          %p521 = pneg %p507
        $region98: #{tpu_custom_call.1} parent=59 // pred_check_branch
          %523 = sbr.rel (%p521) target = $region100
        $region99: #{tpu_custom_call.1} parent=59 // pred_region
          %v524 = vld [vmem:[#allocation2] sm:$0xff]
          %525 = vadd.xlane.f32.xlu0 %v524
          %v526 = vpop.xlane.xlu0 %525
          %v527 = vrot.slane %v526, 4
          %v528 = vadd.f32 %v526, %v527
          %v529 = vrot.slane %v528, 2
          %v530 = vadd.f32 %v528, %v529
          %v531 = vrot.slane %v530, 1
          %v532 = vadd.f32 %v530, %v531
          %s533 = vtos %v532
          %v534 = vlaneseq
          %v535 = vshrl.u32 %v534, 7
          %v536 = vlaneseq
          %v537 = vand.u32 %v536, 127
          %vm538 = vcmp.eq.s32.totalorder %v535, 0
          %vm539 = vcmp.eq.s32.totalorder %v537, 0
          %vm540 = vmand %vm538, %vm539
          %v541 = vstv %s533
          %v542 = vsel %vm540, %v541, 0.0
          %p543 = scmp.ne.s32.totalorder %s37, 0
          // Predicated region
          $region101: #{tpu_custom_call.1} parent=99 // pred_check
            %p544 = pneg %p543
          $region102: #{tpu_custom_call.1} parent=99 // pred_check_branch
            %546 = sbr.rel (%p544) target = $region104
          $region103: #{tpu_custom_call.1} parent=99 // pred_region
            %547 = vst [vmem:[%s504] sm:$0xff] %v542
          $region104: #{tpu_custom_call.1} parent=99 // pred_fallthru
            _
          %p548 = scmp.eq.s32.totalorder %s37, 0
          // Predicated region
          $region105: #{tpu_custom_call.1} parent=99 // pred_check
            %p549 = pneg %p548
          $region106: #{tpu_custom_call.1} parent=99 // pred_check_branch
            %551 = sbr.rel (%p549) target = $region108
          $region107: #{tpu_custom_call.1} parent=99 // pred_region
            %v552 = vld [vmem:[%s9] sm:$0xff]
            %vm553 = vcmp.ne.f32.partialorder %v552, 0.0
            %v554 = vld [vmem:[#allocation11] sm:$0xff]
            %v555 = vld [vmem:[%s5] sm:$0xff]
            %v556 = vsub.f32 %v554, %v555
            %v557 = vsel %vm553, %v556, 0.0
            %v558 = vand.u32 2147483647, %v557
            %559 = vadd.xlane.f32.xlu0 %v558
            %v560 = vpop.xlane.xlu0 %559
            %v561 = vrot.slane %v560, 4
            %v562 = vadd.f32 %v560, %v561
            %v563 = vrot.slane %v562, 2
            %v564 = vadd.f32 %v562, %v563
            %v565 = vrot.slane %v564, 1
            %v566 = vadd.f32 %v564, %v565
            %s567 = vtos %v566
            %v568 = vld [vmem:[#allocation12] sm:$0xff]
            %v569 = vld [vmem:[#allocation14] sm:$0xff]
            %v570 = vsub.f32 %v568, %v569
            %v571 = vsel %vm553, %v570, 0.0
            %v572 = vand.u32 2147483647, %v571
            %573 = vadd.xlane.f32.xlu0 %v572
            %v574 = vpop.xlane.xlu0 %573
            %v575 = vrot.slane %v574, 4
            %v576 = vadd.f32 %v574, %v575
            %v577 = vrot.slane %v576, 2
            %v578 = vadd.f32 %v576, %v577
            %v579 = vrot.slane %v578, 1
            %v580 = vadd.f32 %v578, %v579
            %s581 = vtos %v580
            %v582 = vld [vmem:[#allocation15] sm:$0xff]
            %v583 = vsub.f32 %v582, %v552
            %v584 = vsel %vm553, %v583, 0.0
            %v585 = vand.u32 2147483647, %v584
            %586 = vadd.xlane.f32.xlu0 %v585
            %v587 = vpop.xlane.xlu0 %586
            %v588 = vrot.slane %v587, 4
            %v589 = vadd.f32 %v587, %v588
            %v590 = vrot.slane %v589, 2
            %v591 = vadd.f32 %v589, %v590
            %v592 = vrot.slane %v591, 1
            %v593 = vadd.f32 %v591, %v592
            %s594 = vtos %v593
            %v595 = vld [vmem:[#allocation9] sm:$0xff]
            %vm596 = vcmp.ne.s32.totalorder %v595, 0
            %v597 = vld [vmem:[#allocation8] sm:$0xff]
            %v598 = vcvt.s32.f32 %v595
            %v599 = vsub.f32 %v597, %v598
            %v600 = vsel %vm596, %v599, 0.0
            %v601 = vmul.f32 %v600, %v600
            %602 = vadd.xlane.f32.xlu0 %v601
            %v603 = vpop.xlane.xlu0 %602
            %v604 = vrot.slane %v603, 4
            %v605 = vadd.f32 %v603, %v604
            %v606 = vrot.slane %v605, 2
            %v607 = vadd.f32 %v605, %v606
            %v608 = vrot.slane %v607, 1
            %v609 = vadd.f32 %v607, %v608
            %s610 = vtos %v609
            %vm611 = vcmp.eq.s32.totalorder %v537, 1
            %vm612 = vmand %vm538, %vm611
            %v613 = vstv %s567
            %v614 = vsel %vm612, %v613, %v542
            %vm615 = vcmp.eq.s32.totalorder %v537, 2
            %vm616 = vmand %vm538, %vm615
            %v617 = vstv %s581
            %v618 = vsel %vm616, %v617, %v614
            %vm619 = vcmp.eq.s32.totalorder %v537, 3
            %vm620 = vmand %vm538, %vm619
            %v621 = vstv %s594
            %v622 = vsel %vm620, %v621, %v618
            %vm623 = vcmp.eq.s32.totalorder %v537, 4
            %vm624 = vmand %vm538, %vm623
            %v625 = vstv %s610
            %v626 = vsel %vm624, %v625, %v622
            %627 = vst [vmem:[%s504] sm:$0xff] %v626
          $region108: #{tpu_custom_call.1} parent=99 // pred_fallthru
            _
        $region100: #{tpu_custom_call.1} parent=59 // pred_fallthru
          _
        %s628 = sand.u32 %s277, 1
        %s629 = scalar_lea.sflag [#allocation5], %s628
        %s630 = sand.u32 %s277, 1
        %s631 = smul.addr %s630, 8
        %s632 = scalar_lea.vmem [#allocation17], %s631
        // Predicated region
        $region109: #{tpu_custom_call.1} parent=59 // pred_check
          %p633 = pneg %p287
        $region110: #{tpu_custom_call.1} parent=59 // pred_check_branch
          %635 = sbr.rel (%p633) target = $region112
        $region111: #{tpu_custom_call.1} parent=59 // pred_region
          %s637 = ssub.s32 128, 128
          %638 = vsyncadd %s629, %s637
          %s639 = smul.addr %s37, 128
          %s640 = scalar_lea.hbm %s10, %s639
          %s642 = sshll.u32 %s632, 4
          %s643 = int_to_ptr.vmem [resolvable:$true] %s642
          %645 = dma.vmem_to_hbm [thread:$0]  %s643, 128, %s640, %s629
        $region112: #{tpu_custom_call.1} parent=59 // pred_fallthru
          _
      $region60: #{tpu_custom_call.1} parent=5 // pred_fallthru
        _
      %p646 = scmp.le.s32.totalorder 2, %s28
      // Predicated region
      $region113: #{tpu_custom_call.1} parent=5 // pred_check
        %p647 = pneg %p646
      $region114: #{tpu_custom_call.1} parent=5 // pred_check_branch
        %649 = sbr.rel (%p647) target = $region116
      $region115: #{tpu_custom_call.1} parent=5 // pred_region
        %s650 = ssub.s32 %s28, 2
        // Predicated region
        $region117: #{tpu_custom_call.1} parent=115 // pred_check
          %p651 = pneg %p293
        $region118: #{tpu_custom_call.1} parent=115 // pred_check_branch
          %653 = sbr.rel (%p651) target = $region120
        $region119: #{tpu_custom_call.1} parent=115 // pred_region
          %s654 = sand.u32 %s278, 1
          %s655 = scalar_lea.sflag [#allocation5], %s654
          %s656 = sand.u32 %s278, 1
          %s657 = smul.addr %s656, 8
          %s658 = scalar_lea.vmem [#allocation17], %s657
          %659 = dma.done %s655, 128
        $region120: #{tpu_custom_call.1} parent=115 // pred_fallthru
          _
      $region116: #{tpu_custom_call.1} parent=5 // pred_fallthru
        _
    $region6: #{tpu_custom_call.1} parent=1 // loop_footer
      %s32 = sadd.s32 1, %s28
    $region7: #{tpu_custom_call.1} parent=1 // loop_footer_branch
      %27 = sbr.rel target = $region3
    $region8: #{tpu_custom_call.1} parent=1 // loop_exit
      _
    %660 = vsyncpa [#allocation4], 1
    %s661 = scalar_lea.sflag [#allocation4], 1
    %662 = vsyncpa %s661, 1
    %663 = vsyncpa [#allocation7], 1
    %s664 = scalar_lea.sflag [#allocation7], 1
    %665 = vsyncpa %s664, 1
    %666 = vsyncpa [#allocation10], 1
    %667 = vsyncpa [#allocation13], 1
    %668 = vsyncpa [#allocation16], 1
    %669 = vsyncpa [#allocation5], 1
    %s670 = scalar_lea.sflag [#allocation5], 1
    %671 = vsyncpa %s670, 1

</llo_original>
